<compile_context>
chip_gen: v7x
topology: tpu7x:2x2x1
jax: 0.10.0
libtpu: 0.0.40
codegen_flags: <defaults>
</compile_context>

<pallas_src>
import numpy as np
import jax
import jax.numpy as jnp
from jax.experimental import pallas as pl
from jax.experimental.pallas import tpu as pltpu

# Hyperparameters from Model.__init__
NUM_CLASSES = 4            # unused in forward
USE_ZERO_VECTORS = True
H1 = 32
H2 = 16
L_IN = 4 if USE_ZERO_VECTORS else 3   # sequence length (= in_features)
L_OUT = L_IN - 2                      # k=3/p=1 keeps L; two k=2/p=0 convs drop 2


# --------------------------------- kernel ----------------------------------
def cnn_kernel(x_ref, w1_ref, w2_ref, w3_ref, b1_ref, b2_ref, b3_ref, out_ref):
    # x: (L_IN, tb) -- batch on lanes, compute dtype (bf16 or f32).
    x = x_ref[...]

    # Conv1 as a banded matmul: (L*H1, L_IN) x (L_IN, tb) -> (128, tb) f32.
    h1 = jnp.dot(w1_ref[...], x, preferred_element_type=jnp.float32)
    # Bias (128,1) lane-broadcast + ReLU ride in idle VALU slots.
    h1 = jnp.maximum(h1 + b1_ref[...], 0.0).astype(w2_ref.dtype)

    # Conv2: ((L-1)*H2, L*H1) x (L*H1, tb) -> (48, tb) f32.  K=128 exactly.
    h2 = jnp.dot(w2_ref[...], h1, preferred_element_type=jnp.float32)
    h2 = jnp.maximum(h2 + b2_ref[...], 0.0).astype(w3_ref.dtype)

    # Conv3: (L_OUT, (L-1)*H2) x (48, tb) -> one dense lane-wide store.
    # (Kept on the MXU; only worth moving to VPU+XLU if profiling shows the
    #  MXU slot saturated, which it is not at these sizes.)
    y = jnp.dot(w3_ref[...], h2, preferred_element_type=jnp.float32)
    out_ref[...] = (y + b3_ref[...]).astype(out_ref.dtype)


# ----------------------- host-side weight precomposition --------------------
def pack_params(params, compute_dtype=jnp.bfloat16):
    """Precompose the three convs into block-banded matrices + bias columns.

    Runs once (numpy) — weights are static at inference, so this is hoisted out
    of the per-call path entirely.
    Returns (W1A, W2A, W3A, B1A, B2A, B3A):
      W1A (L*H1, L_IN)          B1A (L*H1, 1)  f32
      W2A ((L-1)*H2, L*H1)      B2A ((L-1)*H2, 1) f32
      W3A (L_OUT, (L-1)*H2)     B3A (L_OUT, 1) f32
    """
    w1, b1, w2, b2, w3, b3 = [np.asarray(p, np.float32) for p in params]
    L = L_IN

    # Layer 1: h1[t*H1 + c] = relu( sum_j w1[c,0,j] * x[t-1+j] + b1[c] )  (pad=1)
    W1A = np.zeros((L * H1, L), np.float32)
    B1A = np.zeros((L * H1, 1), np.float32)
    for t in range(L):
        for j in range(3):
            s = t - 1 + j
            if 0 <= s < L:
                W1A[t * H1:(t + 1) * H1, s] = w1[:, 0, j]
        B1A[t * H1:(t + 1) * H1, 0] = b1

    # Layer 2: h2[t*H2 + c2] = relu( sum_{c1,j} w2[c2,c1,j]*h1[(t+j)*H1+c1] + b2[c2] )
    W2A = np.zeros(((L - 1) * H2, L * H1), np.float32)
    B2A = np.zeros(((L - 1) * H2, 1), np.float32)
    for t in range(L - 1):
        for j in range(2):
            s = t + j
            W2A[t * H2:(t + 1) * H2, s * H1:(s + 1) * H1] = w2[:, :, j]
        B2A[t * H2:(t + 1) * H2, 0] = b2

    # Layer 3: out[t] = sum_{c2,j} w3[0,c2,j]*h2[(t+j)*H2+c2] + b3[0]
    W3A = np.zeros((L_OUT, (L - 1) * H2), np.float32)
    B3A = np.zeros((L_OUT, 1), np.float32)
    for t in range(L_OUT):
        for j in range(2):
            s = t + j
            W3A[t, s * H2:(s + 1) * H2] = w3[0, :, j]
        B3A[t, 0] = b3[0]

    return (jnp.asarray(W1A, compute_dtype),
            jnp.asarray(W2A, compute_dtype),
            jnp.asarray(W3A, compute_dtype),
            jnp.asarray(B1A, jnp.float32),
            jnp.asarray(B2A, jnp.float32),
            jnp.asarray(B3A, jnp.float32))


# ------------------------------ tiling choice --------------------------------
def _cdiv(a, b):
    return -(-a // b)


def _choose_tiling(B):
    """Return (padded batch, lane-dense batch tile).

    - Batch padded to a multiple of 128 -> unmasked lane-dense stores.
    - Even number of grid steps (>=2 when B_pad > 128) so both v7x TCs get work.
    - tb capped at 4096: per-step payload large enough to amortize the ~0.35us
      per-step overhead while intermediates stay ~3 MiB (fits default scoped
      VMEM on v5e/v6e/v7x).
    """
    TB_CAP = 4096
    bp = _cdiv(B, 128) * 128
    if bp <= 128:
        return bp, bp
    steps = max(2, _cdiv(bp, TB_CAP))
    steps += steps % 2
    tb = _cdiv(bp, steps * 128) * 128
    return steps * tb, tb


# --------------------------------- wrapper ----------------------------------
@jax.jit
def model_forward(x, packed):
    """x: (B, L_IN) float32; packed from pack_params. Returns (B, L_OUT) f32."""
    W1A, W2A, W3A, B1A, B2A, B3A = packed
    B = x.shape[0]
    assert x.shape[1] == L_IN
    bp, tb = _choose_tiling(B)
    cdt = W1A.dtype

    xf = x.astype(jnp.float32)
    if bp != B:
        xf = jnp.pad(xf, ((0, bp - B), (0, 0)))      # zero-pad batch to lane multiple
    x_t = xf.T.astype(cdt)                            # (L_IN, bp), lane-dense batch

    out_t = pl.pallas_call(
        cnn_kernel,
        out_shape=jax.ShapeDtypeStruct((L_OUT, bp), jnp.float32),
        grid_spec=pltpu.PrefetchScalarGridSpec(
            num_scalar_prefetch=0,
            grid=(bp // tb,),
            in_specs=[
                pl.BlockSpec((L_IN, tb), lambda i: (0, i)),
                pl.BlockSpec(W1A.shape, lambda i: (0, 0)),
                pl.BlockSpec(W2A.shape, lambda i: (0, 0)),
                pl.BlockSpec(W3A.shape, lambda i: (0, 0)),
                pl.BlockSpec(B1A.shape, lambda i: (0, 0)),
                pl.BlockSpec(B2A.shape, lambda i: (0, 0)),
                pl.BlockSpec(B3A.shape, lambda i: (0, 0)),
            ],
            out_specs=pl.BlockSpec((L_OUT, tb), lambda i: (0, i)),
        ),
        compiler_params=pltpu.CompilerParams(
            dimension_semantics=("parallel",)),
    )(x_t, W1A, W2A, W3A, B1A, B2A, B3A)

    return out_t.T[:B]                                # back to torch layout (B, L_OUT)


# ----------------------- pure-JAX reference (for checking) ------------------
def ref_forward(x, params):
    w1, b1, w2, b2, w3, b3 = params

    def conv1d(h, w, b, pad):
        y = jax.lax.conv_general_dilated(
            h, w, window_strides=(1,), padding=[(pad, pad)],
            dimension_numbers=('NCH', 'OIH', 'NCH'))
        return y + b[None, :, None]

    h = x[:, None, :]                                   # unsqueeze(dim=1)
    h = jax.nn.relu(conv1d(h, w1, b1, 1))
    h = jax.nn.relu(conv1d(h, w2, b2, 0))
    y = conv1d(h, w3, b3, 0)
    return y[:, 0, :]                                   # squeeze(dim=1)


def init_params(key):
    """Deterministic init, torch-layout shapes (Conv1d default uniform ranges)."""
    ks = jax.random.split(key, 6)

    def u(k, shape, fan_in):
        bound = 1.0 / jnp.sqrt(float(fan_in))
        return jax.random.uniform(k, shape, jnp.float32, -bound, bound)

    w1 = u(ks[0], (H1, 1, 3), 1 * 3)
    b1 = u(ks[1], (H1,), 1 * 3)
    w2 = u(ks[2], (H2, H1, 2), H1 * 2)
    b2 = u(ks[3], (H2,), H1 * 2)
    w3 = u(ks[4], (1, H2, 2), H2 * 2)
    b3 = u(ks[5], (1,), H2 * 2)
    return (w1, b1, w2, b2, w3, b3)


if __name__ == "__main__":
    key = jax.random.PRNGKey(0)
    kx1, kx2, kp = jax.random.split(key, 3)
    params = init_params(kp)

    # Weight packing is hoisted: done once, reused across calls.
    packed_bf16 = pack_params(params, jnp.bfloat16)   # fast path (v5e/v6e/v7x MXU)
    packed_f32 = pack_params(params, jnp.float32)     # exact path for verification

    # Small batch, bf16 operands: padded to one 128-lane tile, single grid step.
    B1_ = 16
    x1 = jax.random.normal(kx1, (B1_, L_IN), dtype=jnp.float32)
    out1 = jax.block_until_ready(model_forward(x1, packed_bf16))
    ref1 = jax.block_until_ready(ref_forward(x1, params))
    assert out1.shape == (B1_, L_OUT), out1.shape
    assert jnp.allclose(out1, ref1, rtol=1e-1, atol=1e-1), (
        float(jnp.max(jnp.abs(out1 - ref1))))

    # Non-128-multiple batch, exact f32 operands: pad to 512, 2-step (megacore) split.
    B2_ = 400
    x2 = jax.random.normal(kx2, (B2_, L_IN), dtype=jnp.float32)
    out2 = jax.block_until_ready(model_forward(x2, packed_f32))
    ref2 = jax.block_until_ready(ref_forward(x2, params))
    assert out2.shape == (B2_, L_OUT), out2.shape
    assert jnp.allclose(out2, ref2, rtol=1e-5, atol=1e-5), (
        float(jnp.max(jnp.abs(out2 - ref2))))

    print("KERNEL_OK")
</pallas_src>

<mosaic_0001>
module attributes {stable_mosaic.version = 11 : i64} {
  func.func @cnn_kernel(%arg0: i32, %arg1: memref<4x128xbf16, #tpu.memory_space<vmem>>, %arg2: memref<128x4xbf16, #tpu.memory_space<vmem>>, %arg3: memref<48x128xbf16, #tpu.memory_space<vmem>>, %arg4: memref<2x48xbf16, #tpu.memory_space<vmem>>, %arg5: memref<128x1xf32, #tpu.memory_space<vmem>>, %arg6: memref<48x1xf32, #tpu.memory_space<vmem>>, %arg7: memref<2x1xf32, #tpu.memory_space<vmem>>, %arg8: memref<2x128xf32, #tpu.memory_space<vmem>>) attributes {dimension_semantics = [#tpu.dimension_semantics<parallel>], iteration_bounds = array<i64: 1>, scalar_prefetch = 0 : i64, scratch_operands = 0 : i64, tpu.core_type = #tpu.core_type<tc>, window_params = [{transform_indices = @transform_0, window_bounds = array<i64: 4, 128>}, {pipeline_mode = #tpu.pipeline_mode<synchronous>, transform_indices = @transform_1, window_bounds = array<i64: 128, 4>}, {pipeline_mode = #tpu.pipeline_mode<synchronous>, transform_indices = @transform_2, window_bounds = array<i64: 48, 128>}, {pipeline_mode = #tpu.pipeline_mode<synchronous>, transform_indices = @transform_3, window_bounds = array<i64: 2, 48>}, {pipeline_mode = #tpu.pipeline_mode<synchronous>, transform_indices = @transform_4, window_bounds = array<i64: 128, 1>}, {pipeline_mode = #tpu.pipeline_mode<synchronous>, transform_indices = @transform_5, window_bounds = array<i64: 48, 1>}, {pipeline_mode = #tpu.pipeline_mode<synchronous>, transform_indices = @transform_6, window_bounds = array<i64: 2, 1>}, {transform_indices = @transform_7, window_bounds = array<i64: 2, 128>}]} {
    %c0 = arith.constant 0 : index
    %c0_0 = arith.constant 0 : index
    %0 = vector.load %arg1[%c0, %c0_0] : memref<4x128xbf16, #tpu.memory_space<vmem>>, vector<4x128xbf16>
    %c0_1 = arith.constant 0 : index
    %c0_2 = arith.constant 0 : index
    %1 = vector.load %arg2[%c0_1, %c0_2] : memref<128x4xbf16, #tpu.memory_space<vmem>>, vector<128x4xbf16>
    %cst = arith.constant dense<0.000000e+00> : vector<128x128xf32>
    %2 = tpu.matmul %1, %0, %cst {dimension_numbers = #tpu.dot_dimension_numbers<[1], [0], [0], [1], [0, 0, 1, 1], [], []>} : vector<128x4xbf16>, vector<4x128xbf16>, vector<128x128xf32> -> vector<128x128xf32>
    %c0_3 = arith.constant 0 : index
    %c0_4 = arith.constant 0 : index
    %3 = vector.load %arg5[%c0_3, %c0_4] : memref<128x1xf32, #tpu.memory_space<vmem>>, vector<128x1xf32>
    %4 = vector.broadcast %3 : vector<128x1xf32> to vector<128x128xf32>
    %5 = arith.addf %2, %4 : vector<128x128xf32>
    %cst_5 = arith.constant 0.000000e+00 : f32
    %6 = vector.broadcast %cst_5 : f32 to vector<128x128xf32>
    %7 = arith.maximumf %5, %6 : vector<128x128xf32>
    %8 = arith.truncf %7 : vector<128x128xf32> to vector<128x128xbf16>
    %c0_6 = arith.constant 0 : index
    %c0_7 = arith.constant 0 : index
    %9 = vector.load %arg3[%c0_6, %c0_7] : memref<48x128xbf16, #tpu.memory_space<vmem>>, vector<48x128xbf16>
    %cst_8 = arith.constant dense<0.000000e+00> : vector<48x128xf32>
    %10 = tpu.matmul %9, %8, %cst_8 {dimension_numbers = #tpu.dot_dimension_numbers<[1], [0], [0], [1], [0, 0, 1, 1], [], []>} : vector<48x128xbf16>, vector<128x128xbf16>, vector<48x128xf32> -> vector<48x128xf32>
    %c0_9 = arith.constant 0 : index
    %c0_10 = arith.constant 0 : index
    %11 = vector.load %arg6[%c0_9, %c0_10] : memref<48x1xf32, #tpu.memory_space<vmem>>, vector<48x1xf32>
    %12 = vector.broadcast %11 : vector<48x1xf32> to vector<48x128xf32>
    %13 = arith.addf %10, %12 : vector<48x128xf32>
    %cst_11 = arith.constant 0.000000e+00 : f32
    %14 = vector.broadcast %cst_11 : f32 to vector<48x128xf32>
    %15 = arith.maximumf %13, %14 : vector<48x128xf32>
    %16 = arith.truncf %15 : vector<48x128xf32> to vector<48x128xbf16>
    %c0_12 = arith.constant 0 : index
    %c0_13 = arith.constant 0 : index
    %17 = vector.load %arg4[%c0_12, %c0_13] : memref<2x48xbf16, #tpu.memory_space<vmem>>, vector<2x48xbf16>
    %cst_14 = arith.constant dense<0.000000e+00> : vector<2x128xf32>
    %18 = tpu.matmul %17, %16, %cst_14 {dimension_numbers = #tpu.dot_dimension_numbers<[1], [0], [0], [1], [0, 0, 1, 1], [], []>} : vector<2x48xbf16>, vector<48x128xbf16>, vector<2x128xf32> -> vector<2x128xf32>
    %c0_15 = arith.constant 0 : index
    %c0_16 = arith.constant 0 : index
    %19 = vector.load %arg7[%c0_15, %c0_16] : memref<2x1xf32, #tpu.memory_space<vmem>>, vector<2x1xf32>
    %20 = vector.broadcast %19 : vector<2x1xf32> to vector<2x128xf32>
    %21 = arith.addf %18, %20 : vector<2x128xf32>
    %c0_17 = arith.constant 0 : index
    %c0_18 = arith.constant 0 : index
    %22 = vector.load %arg8[%c0_17, %c0_18] : memref<2x128xf32, #tpu.memory_space<vmem>>, vector<2x128xf32>
    tpu.vector_store %arg8[%c0_17, %c0_18], %21 {strides = array<i32>} : memref<2x128xf32, #tpu.memory_space<vmem>>, vector<2x128xf32>,
    return
  }
  func.func @transform_0(%arg0: i32) -> (i32, i32) {
    %c0_i32 = arith.constant 0 : i32
    %c0_i32_0 = arith.constant 0 : i32
    return %c0_i32, %arg0 : i32, i32
  }
  func.func @transform_1(%arg0: i32) -> (i32, i32) {
    %c0_i32 = arith.constant 0 : i32
    %c0_i32_0 = arith.constant 0 : i32
    %c0_i32_1 = arith.constant 0 : i32
    return %c0_i32, %c0_i32_0 : i32, i32
  }
  func.func @transform_2(%arg0: i32) -> (i32, i32) {
    %c0_i32 = arith.constant 0 : i32
    %c0_i32_0 = arith.constant 0 : i32
    %c0_i32_1 = arith.constant 0 : i32
    return %c0_i32, %c0_i32_0 : i32, i32
  }
  func.func @transform_3(%arg0: i32) -> (i32, i32) {
    %c0_i32 = arith.constant 0 : i32
    %c0_i32_0 = arith.constant 0 : i32
    %c0_i32_1 = arith.constant 0 : i32
    return %c0_i32, %c0_i32_0 : i32, i32
  }
  func.func @transform_4(%arg0: i32) -> (i32, i32) {
    %c0_i32 = arith.constant 0 : i32
    %c0_i32_0 = arith.constant 0 : i32
    %c0_i32_1 = arith.constant 0 : i32
    return %c0_i32, %c0_i32_0 : i32, i32
  }
  func.func @transform_5(%arg0: i32) -> (i32, i32) {
    %c0_i32 = arith.constant 0 : i32
    %c0_i32_0 = arith.constant 0 : i32
    %c0_i32_1 = arith.constant 0 : i32
    return %c0_i32, %c0_i32_0 : i32, i32
  }
  func.func @transform_6(%arg0: i32) -> (i32, i32) {
    %c0_i32 = arith.constant 0 : i32
    %c0_i32_0 = arith.constant 0 : i32
    %c0_i32_1 = arith.constant 0 : i32
    return %c0_i32, %c0_i32_0 : i32, i32
  }
  func.func @transform_7(%arg0: i32) -> (i32, i32) {
    %c0_i32 = arith.constant 0 : i32
    %c0_i32_0 = arith.constant 0 : i32
    return %c0_i32, %arg0 : i32, i32
  }
}

</mosaic_0001>

<llo_original>
// kernel: model_forward.1
$region0: #{model_forward.1}
  #allocation0 [shape = 'u32[]', space=smem, size = 0x4, offset = 0x4, fixed_abs, tag = 'smem constant byte address 0x4 - core index']
  #allocation1 [shape = 'u32[144,128]{1,0:T(1,128)}', space=vmem, size = 0x12000, scoped, tag = 'internal scratch']
  %s0 = inlined_call_operand.vmem [shape: bf16[4,128], index: 0, kind: input, shape index: {}]
  %s1 = inlined_call_operand.vmem [shape: bf16[128,4], index: 1, kind: input, shape index: {}]
  %s2 = inlined_call_operand.vmem [shape: bf16[48,128], index: 2, kind: input, shape index: {}]
  %s3 = inlined_call_operand.vmem [shape: bf16[2,48], index: 3, kind: input, shape index: {}]
  %s4 = inlined_call_operand.vmem [shape: f32[128,1], index: 4, kind: input, shape index: {}]
  %s5 = inlined_call_operand.vmem [shape: f32[48,1], index: 5, kind: input, shape index: {}]
  %s6 = inlined_call_operand.vmem [shape: f32[2,1], index: 6, kind: input, shape index: {}]
  %s7 = inlined_call_operand.hbm [shape: f32[2,128], index: 7, kind: output, shape index: {}]
  %s8 = sld [smem:[#allocation0]]
  $region38: #{model_forward.1} parent=0
    _
  %s10 = ssub.s32 1, %s8
  %s11 = scalar_select 0, %s10, %s8
  $region1: #{model_forward.1} parent=0
    #allocation2 [shape = 'u8[1024]{0}', space=vmem, size = 0x400, scoped, tag = 'output window, operand 0, single buffered']
    #allocation3 [shape = 's32[1]{0}', space=sflag, size = 0x4, scoped, tag = 'scoped memory for model_forward.1']
    %12 = vsyncpa [#allocation3], 0
    // Predicated region
    $region2: #{model_forward.1} parent=1 // pred_check
      _
    $region3: #{model_forward.1} parent=1 // pred_check_branch
      %14 = sbr.rel (0) target = $region5
    $region4: #{model_forward.1} parent=1 // pred_region
      _
    $region5: #{model_forward.1} parent=1 // pred_fallthru
      _
    // Predicated region
    $region6: #{model_forward.1} parent=1 // pred_check
      _
    $region7: #{model_forward.1} parent=1 // pred_check_branch
      %16 = sbr.rel (0) target = $region9
    $region8: #{model_forward.1} parent=1 // pred_region
      _
    $region9: #{model_forward.1} parent=1 // pred_fallthru
      _
    // Predicated region
    $region10: #{model_forward.1} parent=1 // pred_check
      _
    $region11: #{model_forward.1} parent=1 // pred_check_branch
      %18 = sbr.rel (0) target = $region13
    $region12: #{model_forward.1} parent=1 // pred_region
      _
    $region13: #{model_forward.1} parent=1 // pred_fallthru
      _
    // Predicated region
    $region14: #{model_forward.1} parent=1 // pred_check
      _
    $region15: #{model_forward.1} parent=1 // pred_check_branch
      %20 = sbr.rel (0) target = $region17
    $region16: #{model_forward.1} parent=1 // pred_region
      _
    $region17: #{model_forward.1} parent=1 // pred_fallthru
      _
    // Predicated region
    $region18: #{model_forward.1} parent=1 // pred_check
      _
    $region19: #{model_forward.1} parent=1 // pred_check_branch
      %22 = sbr.rel (0) target = $region21
    $region20: #{model_forward.1} parent=1 // pred_region
      _
    $region21: #{model_forward.1} parent=1 // pred_fallthru
      _
    // Predicated region
    $region22: #{model_forward.1} parent=1 // pred_check
      _
    $region23: #{model_forward.1} parent=1 // pred_check_branch
      %24 = sbr.rel (0) target = $region25
    $region24: #{model_forward.1} parent=1 // pred_region
      _
    $region25: #{model_forward.1} parent=1 // pred_fallthru
      _
    // Predicated region
    $region26: #{model_forward.1} parent=1 // pred_check
      _
    $region27: #{model_forward.1} parent=1 // pred_check_branch
      %26 = sbr.rel (0) target = $region29
    $region28: #{model_forward.1} parent=1 // pred_region
      _
    $region29: #{model_forward.1} parent=1 // pred_fallthru
      _
    %v28 = vld [vmem:[%s0] sm:$0x3]
    %v29 = vld [vmem:[%s1] sm:$0xf]
    %v30 = vld [vmem:[%s1 + $0x4] sm:$0xf]
    %v31 = vld [vmem:[%s1 + $0x8] sm:$0xf]
    %v32 = vld [vmem:[%s1 + $0xc] sm:$0xf]
    %v33 = vld [vmem:[%s1 + $0x10] sm:$0xf]
    %v34 = vld [vmem:[%s1 + $0x14] sm:$0xf]
    %v35 = vld [vmem:[%s1 + $0x18] sm:$0xf]
    %v36 = vld [vmem:[%s1 + $0x1c] sm:$0xf]
    %v37 = vld [vmem:[%s1 + $0x20] sm:$0xf]
    %v38 = vld [vmem:[%s1 + $0x24] sm:$0xf]
    %v39 = vld [vmem:[%s1 + $0x28] sm:$0xf]
    %v40 = vld [vmem:[%s1 + $0x2c] sm:$0xf]
    %v41 = vld [vmem:[%s1 + $0x30] sm:$0xf]
    %v42 = vld [vmem:[%s1 + $0x34] sm:$0xf]
    %v43 = vld [vmem:[%s1 + $0x38] sm:$0xf]
    %v44 = vld [vmem:[%s1 + $0x3c] sm:$0xf]
    %v45 = vld [vmem:[%s4] sm:$0xff]
    %v46 = vld [vmem:[%s4 + $0x8] sm:$0xff]
    %v47 = vld [vmem:[%s4 + $0x10] sm:$0xff]
    %v48 = vld [vmem:[%s4 + $0x18] sm:$0xff]
    %v49 = vld [vmem:[%s4 + $0x20] sm:$0xff]
    %v50 = vld [vmem:[%s4 + $0x28] sm:$0xff]
    %v51 = vld [vmem:[%s4 + $0x30] sm:$0xff]
    %v52 = vld [vmem:[%s4 + $0x38] sm:$0xff]
    %v53 = vld [vmem:[%s4 + $0x40] sm:$0xff]
    %v54 = vld [vmem:[%s4 + $0x48] sm:$0xff]
    %v55 = vld [vmem:[%s4 + $0x50] sm:$0xff]
    %v56 = vld [vmem:[%s4 + $0x58] sm:$0xff]
    %v57 = vld [vmem:[%s4 + $0x60] sm:$0xff]
    %v58 = vld [vmem:[%s4 + $0x68] sm:$0xff]
    %v59 = vld [vmem:[%s4 + $0x70] sm:$0xff]
    %v60 = vld [vmem:[%s4 + $0x78] sm:$0xff]
    %62 = vset.pattern.permute.xlu0 0
    %63 = vperm.xlu0 %62, %v45
    %v64 = vpop.permute.xlu0 %63
    %67 = vset.pattern.permute.xlu0 0
    %68 = vperm.xlu0 %67, %v46
    %v69 = vpop.permute.xlu0 %68
    %72 = vset.pattern.permute.xlu0 0
    %73 = vperm.xlu0 %72, %v47
    %v74 = vpop.permute.xlu0 %73
    %77 = vset.pattern.permute.xlu0 0
    %78 = vperm.xlu0 %77, %v48
    %v79 = vpop.permute.xlu0 %78
    %82 = vset.pattern.permute.xlu0 0
    %83 = vperm.xlu0 %82, %v49
    %v84 = vpop.permute.xlu0 %83
    %87 = vset.pattern.permute.xlu0 0
    %88 = vperm.xlu0 %87, %v50
    %v89 = vpop.permute.xlu0 %88
    %92 = vset.pattern.permute.xlu0 0
    %93 = vperm.xlu0 %92, %v51
    %v94 = vpop.permute.xlu0 %93
    %97 = vset.pattern.permute.xlu0 0
    %98 = vperm.xlu0 %97, %v52
    %v99 = vpop.permute.xlu0 %98
    %102 = vset.pattern.permute.xlu0 0
    %103 = vperm.xlu0 %102, %v53
    %v104 = vpop.permute.xlu0 %103
    %107 = vset.pattern.permute.xlu0 0
    %108 = vperm.xlu0 %107, %v54
    %v109 = vpop.permute.xlu0 %108
    %112 = vset.pattern.permute.xlu0 0
    %113 = vperm.xlu0 %112, %v55
    %v114 = vpop.permute.xlu0 %113
    %117 = vset.pattern.permute.xlu0 0
    %118 = vperm.xlu0 %117, %v56
    %v119 = vpop.permute.xlu0 %118
    %122 = vset.pattern.permute.xlu0 0
    %123 = vperm.xlu0 %122, %v57
    %v124 = vpop.permute.xlu0 %123
    %127 = vset.pattern.permute.xlu0 0
    %128 = vperm.xlu0 %127, %v58
    %v129 = vpop.permute.xlu0 %128
    %132 = vset.pattern.permute.xlu0 0
    %133 = vperm.xlu0 %132, %v59
    %v134 = vpop.permute.xlu0 %133
    %137 = vset.pattern.permute.xlu0 0
    %138 = vperm.xlu0 %137, %v60
    %v139 = vpop.permute.xlu0 %138
    %v157 = vunpack.c.l.b16 %v29
    %v158 = vunpack.c.l.b16 %v30
    %v159 = vunpack.c.l.b16 %v31
    %v160 = vunpack.c.l.b16 %v32
    %v161 = vunpack.c.l.b16 %v33
    %v162 = vunpack.c.l.b16 %v34
    %v163 = vunpack.c.l.b16 %v35
    %v164 = vunpack.c.l.b16 %v36
    %v165 = vunpack.c.l.b16 %v37
    %v166 = vunpack.c.l.b16 %v38
    %v167 = vunpack.c.l.b16 %v39
    %v168 = vunpack.c.l.b16 %v40
    %v169 = vunpack.c.l.b16 %v41
    %v170 = vunpack.c.l.b16 %v42
    %v171 = vunpack.c.l.b16 %v43
    %v172 = vunpack.c.l.b16 %v44
    %v173 = vpack.c.b16 %v158, %v157
    %v174 = vpack.c.b16 %v160, %v159
    %v175 = vpack.c.b16 %v162, %v161
    %v176 = vpack.c.b16 %v164, %v163
    %v177 = vpack.c.b16 %v166, %v165
    %v178 = vpack.c.b16 %v168, %v167
    %v179 = vpack.c.b16 %v170, %v169
    %v180 = vpack.c.b16 %v172, %v171
    %vm181 = vcmask 31744
    %v183 = vsel %vm181, %v173, 0
    %v186 = vsel %vm181, %v174, 0
    %v189 = vsel %vm181, %v175, 0
    %v192 = vsel %vm181, %v176, 0
    %v195 = vsel %vm181, %v177, 0
    %v198 = vsel %vm181, %v178, 0
    %v201 = vsel %vm181, %v179, 0
    %v204 = vsel %vm181, %v180, 0
    %vm206 = vcmask 1041408
    %v208 = vsel %vm206, %v28, 0
    %210 = vmatprep.subr.bf16.mxu0 0
    %211 = vmatpush1.bf16.msra.mxu0 %v208
    %212 = vmatprep.subr.bf16.mxu0 0
    %213 = vmatpush1.bf16.msra.mxu0 0
    %214 = vmatprep.subr.bf16.mxu0 0
    %215 = vmatpush1.bf16.msra.mxu0 0
    %216 = vmatprep.subr.bf16.mxu0 0
    %217 = vmatpush1.bf16.msra.mxu0 0
    %218 = vmatprep.subr.bf16.mxu0 0
    %219 = vmatpush1.bf16.msra.mxu0 0
    %220 = vmatprep.subr.bf16.mxu0 0
    %221 = vmatpush1.bf16.msra.mxu0 0
    %222 = vmatprep.subr.bf16.mxu0 0
    %223 = vmatpush1.bf16.msra.mxu0 0
    %224 = vmatprep.subr.bf16.mxu0 0
    %225 = vmatpush1.bf16.msra.mxu0 0
    %226 = vmatprep.subr.bf16.mxu0 0
    %227 = vmatpush1.bf16.msra.mxu0 0
    %228 = vmatprep.subr.bf16.mxu0 0
    %229 = vmatpush1.bf16.msra.mxu0 0
    %230 = vmatprep.subr.bf16.mxu0 0
    %231 = vmatpush1.bf16.msra.mxu0 0
    %232 = vmatprep.subr.bf16.mxu0 0
    %233 = vmatpush1.bf16.msra.mxu0 0
    %234 = vmatprep.subr.bf16.mxu0 0
    %235 = vmatpush1.bf16.msra.mxu0 0
    %236 = vmatprep.subr.bf16.mxu0 0
    %237 = vmatpush1.bf16.msra.mxu0 0
    %238 = vmatprep.subr.bf16.mxu0 0
    %239 = vmatpush1.bf16.msra.mxu0 0
    %240 = vmatprep.subr.bf16.mxu0 0
    %241 = vmatpush1.bf16.msra.mxu0 0
    %242 = vmatprep.mubr.bf16.mxu0 0
    %243 = vmatmul.mubr.bf16.gmra.mrb[0].mxu0 %v183
    %v244 = vpop.f32.mrb[0].mxu0
    %v245 = vadd.f32 %v64, %v244
    %v246 = vpop.f32.mrb[0].mxu0
    %v247 = vpop.f32.mrb[0].mxu0
    %v248 = vadd.f32 %v69, %v247
    %v249 = vpop.f32.mrb[0].mxu0
    %250 = vmatprep.mubr.bf16.mxu0 0
    %251 = vmatmul.mubr.bf16.gmra.mrb[0].mxu0 %v186
    %v252 = vpop.f32.mrb[0].mxu0
    %v253 = vadd.f32 %v74, %v252
    %v254 = vpop.f32.mrb[0].mxu0
    %v255 = vpop.f32.mrb[0].mxu0
    %v256 = vadd.f32 %v79, %v255
    %v257 = vpop.f32.mrb[0].mxu0
    %258 = vmatprep.mubr.bf16.mxu0 0
    %259 = vmatmul.mubr.bf16.gmra.mrb[0].mxu0 %v189
    %v260 = vpop.f32.mrb[0].mxu0
    %v261 = vadd.f32 %v84, %v260
    %v262 = vpop.f32.mrb[0].mxu0
    %v263 = vpop.f32.mrb[0].mxu0
    %v264 = vadd.f32 %v89, %v263
    %v265 = vpop.f32.mrb[0].mxu0
    %266 = vmatprep.mubr.bf16.mxu0 0
    %267 = vmatmul.mubr.bf16.gmra.mrb[0].mxu0 %v192
    %v268 = vpop.f32.mrb[0].mxu0
    %v269 = vadd.f32 %v94, %v268
    %v270 = vpop.f32.mrb[0].mxu0
    %v271 = vpop.f32.mrb[0].mxu0
    %v272 = vadd.f32 %v99, %v271
    %v273 = vpop.f32.mrb[0].mxu0
    %274 = vmatprep.mubr.bf16.mxu0 0
    %275 = vmatmul.mubr.bf16.gmra.mrb[0].mxu0 %v195
    %v276 = vpop.f32.mrb[0].mxu0
    %v277 = vadd.f32 %v104, %v276
    %v278 = vpop.f32.mrb[0].mxu0
    %v279 = vpop.f32.mrb[0].mxu0
    %v280 = vadd.f32 %v109, %v279
    %v281 = vpop.f32.mrb[0].mxu0
    %282 = vmatprep.mubr.bf16.mxu0 0
    %283 = vmatmul.mubr.bf16.gmra.mrb[0].mxu0 %v198
    %v284 = vpop.f32.mrb[0].mxu0
    %v285 = vadd.f32 %v114, %v284
    %v286 = vpop.f32.mrb[0].mxu0
    %v287 = vpop.f32.mrb[0].mxu0
    %v288 = vadd.f32 %v119, %v287
    %v289 = vpop.f32.mrb[0].mxu0
    %290 = vmatprep.mubr.bf16.mxu0 0
    %291 = vmatmul.mubr.bf16.gmra.mrb[0].mxu0 %v201
    %v292 = vpop.f32.mrb[0].mxu0
    %v293 = vadd.f32 %v124, %v292
    %v294 = vpop.f32.mrb[0].mxu0
    %v295 = vpop.f32.mrb[0].mxu0
    %v296 = vadd.f32 %v129, %v295
    %v297 = vpop.f32.mrb[0].mxu0
    %298 = vmatprep.mubr.bf16.mxu0 0
    %299 = vmatmul.mubr.bf16.gmra.mrb[0].mxu0 %v204
    %v300 = vpop.f32.mrb[0].mxu0
    %v301 = vadd.f32 %v134, %v300
    %v302 = vpop.f32.mrb[0].mxu0
    %v303 = vpop.f32.mrb[0].mxu0
    %v304 = vadd.f32 %v139, %v303
    %v305 = vpop.f32.mrb[0].mxu0
    %306 = vdwg.mxu0
    %v307 = vmax.f32 %v245, 0.0
    %v308 = vmax.f32 %v248, 0.0
    %v309 = vmax.f32 %v253, 0.0
    %v310 = vmax.f32 %v256, 0.0
    %v311 = vmax.f32 %v261, 0.0
    %v312 = vmax.f32 %v264, 0.0
    %v313 = vmax.f32 %v269, 0.0
    %v314 = vmax.f32 %v272, 0.0
    %v315 = vmax.f32 %v277, 0.0
    %v316 = vmax.f32 %v280, 0.0
    %v317 = vmax.f32 %v285, 0.0
    %v318 = vmax.f32 %v288, 0.0
    %v319 = vmax.f32 %v293, 0.0
    %v320 = vmax.f32 %v296, 0.0
    %v321 = vmax.f32 %v301, 0.0
    %v322 = vmax.f32 %v304, 0.0
    %v323 = vpack.c.bf16 %v308, %v307
    %v324 = vpack.c.bf16 %v310, %v309
    %v325 = vpack.c.bf16 %v312, %v311
    %v326 = vpack.c.bf16 %v314, %v313
    %v327 = vpack.c.bf16 %v316, %v315
    %v328 = vpack.c.bf16 %v318, %v317
    %v329 = vpack.c.bf16 %v320, %v319
    %v330 = vpack.c.bf16 %v322, %v321
    %v331 = vld [vmem:[%s2] sm:$0xf]
    %v332 = vld [vmem:[%s2 + $0x4] sm:$0xf]
    %v333 = vld [vmem:[%s2 + $0x8] sm:$0xf]
    %v334 = vld [vmem:[%s2 + $0xc] sm:$0xf]
    %v335 = vld [vmem:[%s2 + $0x10] sm:$0xf]
    %v336 = vld [vmem:[%s2 + $0x14] sm:$0xf]
    %v337 = vld [vmem:[%s5] sm:$0xff]
    %v338 = vld [vmem:[%s5 + $0x8] sm:$0xff]
    %v339 = vld [vmem:[%s5 + $0x10] sm:$0xff]
    %v340 = vld [vmem:[%s5 + $0x18] sm:$0xff]
    %v341 = vld [vmem:[%s5 + $0x20] sm:$0xff]
    %v342 = vld [vmem:[%s5 + $0x28] sm:$0xff]
    %344 = vset.pattern.permute.xlu0 0
    %345 = vperm.xlu0 %344, %v337
    %v346 = vpop.permute.xlu0 %345
    %349 = vset.pattern.permute.xlu0 0
    %350 = vperm.xlu0 %349, %v338
    %v351 = vpop.permute.xlu0 %350
    %354 = vset.pattern.permute.xlu0 0
    %355 = vperm.xlu0 %354, %v339
    %v356 = vpop.permute.xlu0 %355
    %359 = vset.pattern.permute.xlu0 0
    %360 = vperm.xlu0 %359, %v340
    %v361 = vpop.permute.xlu0 %360
    %364 = vset.pattern.permute.xlu0 0
    %365 = vperm.xlu0 %364, %v341
    %v366 = vpop.permute.xlu0 %365
    %369 = vset.pattern.permute.xlu0 0
    %370 = vperm.xlu0 %369, %v342
    %v371 = vpop.permute.xlu0 %370
    %v379 = vunpack.c.l.b16 %v331
    %v380 = vunpack.c.l.b16 %v332
    %v381 = vunpack.c.l.b16 %v333
    %v382 = vunpack.c.l.b16 %v334
    %v383 = vunpack.c.l.b16 %v335
    %v384 = vunpack.c.l.b16 %v336
    %v385 = vpack.c.b16 %v380, %v379
    %v386 = vpack.c.b16 %v382, %v381
    %v387 = vpack.c.b16 %v384, %v383
    %391 = vmatprep.subr.bf16.mxu0 0
    %392 = vmatpush1.bf16.msra.mxu0 %v323
    %393 = vmatprep.subr.bf16.mxu0 0
    %394 = vmatpush1.bf16.msra.mxu0 %v324
    %395 = vmatprep.subr.bf16.mxu0 0
    %396 = vmatpush1.bf16.msra.mxu0 %v325
    %397 = vmatprep.subr.bf16.mxu0 0
    %398 = vmatpush1.bf16.msra.mxu0 %v326
    %399 = vmatprep.subr.bf16.mxu0 0
    %400 = vmatpush1.bf16.msra.mxu0 %v327
    %401 = vmatprep.subr.bf16.mxu0 0
    %402 = vmatpush1.bf16.msra.mxu0 %v328
    %403 = vmatprep.subr.bf16.mxu0 0
    %404 = vmatpush1.bf16.msra.mxu0 %v329
    %405 = vmatprep.subr.bf16.mxu0 0
    %406 = vmatpush1.bf16.msra.mxu0 %v330
    %407 = vmatprep.subr.bf16.mxu0 0
    %408 = vmatpush1.bf16.msra.mxu0 0
    %409 = vmatprep.subr.bf16.mxu0 0
    %410 = vmatpush1.bf16.msra.mxu0 0
    %411 = vmatprep.subr.bf16.mxu0 0
    %412 = vmatpush1.bf16.msra.mxu0 0
    %413 = vmatprep.subr.bf16.mxu0 0
    %414 = vmatpush1.bf16.msra.mxu0 0
    %415 = vmatprep.subr.bf16.mxu0 0
    %416 = vmatpush1.bf16.msra.mxu0 0
    %417 = vmatprep.subr.bf16.mxu0 0
    %418 = vmatpush1.bf16.msra.mxu0 0
    %419 = vmatprep.subr.bf16.mxu0 0
    %420 = vmatpush1.bf16.msra.mxu0 0
    %421 = vmatprep.subr.bf16.mxu0 0
    %422 = vmatpush1.bf16.msra.mxu0 0
    %423 = vmatprep.mubr.bf16.mxu0 0
    %424 = vmatmul.mubr.bf16.gmra.mrb[0].mxu0 %v385
    %v425 = vpop.f32.mrb[0].mxu0
    %v426 = vadd.f32 %v346, %v425
    %v427 = vpop.f32.mrb[0].mxu0
    %v428 = vpop.f32.mrb[0].mxu0
    %v429 = vadd.f32 %v351, %v428
    %v430 = vpop.f32.mrb[0].mxu0
    %431 = vmatprep.mubr.bf16.mxu0 0
    %432 = vmatmul.mubr.bf16.gmra.mrb[0].mxu0 %v386
    %v433 = vpop.f32.mrb[0].mxu0
    %v434 = vadd.f32 %v356, %v433
    %v435 = vpop.f32.mrb[0].mxu0
    %v436 = vpop.f32.mrb[0].mxu0
    %v437 = vadd.f32 %v361, %v436
    %v438 = vpop.f32.mrb[0].mxu0
    %439 = vmatprep.mubr.bf16.mxu0 0
    %440 = vmatmul.mubr.bf16.gmra.mrb[0].mxu0 %v387
    %v441 = vpop.f32.mrb[0].mxu0
    %v442 = vadd.f32 %v366, %v441
    %v443 = vpop.f32.mrb[0].mxu0
    %v444 = vpop.f32.mrb[0].mxu0
    %v445 = vadd.f32 %v371, %v444
    %v446 = vpop.f32.mrb[0].mxu0
    %447 = vdwg.mxu0
    %v448 = vmax.f32 %v426, 0.0
    %v449 = vmax.f32 %v429, 0.0
    %v450 = vmax.f32 %v434, 0.0
    %v451 = vmax.f32 %v437, 0.0
    %v452 = vmax.f32 %v442, 0.0
    %v453 = vmax.f32 %v445, 0.0
    %v454 = vpack.c.bf16 %v449, %v448
    %v455 = vpack.c.bf16 %v451, %v450
    %v456 = vpack.c.bf16 %v453, %v452
    %v457 = vld [vmem:[%s3] sm:$0x1]
    %v458 = vld [vmem:[%s6] sm:$0x3]
    %460 = vset.pattern.permute.xlu0 0
    %461 = vperm.xlu0 %460, %v458
    %v462 = vpop.permute.xlu0 %461
    %vm464 = vcmask 392192
    %v466 = vsel %vm464, %v457, 0
    %468 = vmatprep.subr.bf16.mxu0 0
    %469 = vmatpush1.bf16.msra.mxu0 %v454
    %470 = vmatprep.subr.bf16.mxu0 0
    %471 = vmatpush1.bf16.msra.mxu0 %v455
    %472 = vmatprep.subr.bf16.mxu0 0
    %473 = vmatpush1.bf16.msra.mxu0 %v456
    %474 = vmatprep.subr.bf16.mxu0 0
    %475 = vmatpush1.bf16.msra.mxu0 0
    %476 = vmatprep.subr.bf16.mxu0 0
    %477 = vmatpush1.bf16.msra.mxu0 0
    %478 = vmatprep.subr.bf16.mxu0 0
    %479 = vmatpush1.bf16.msra.mxu0 0
    %480 = vmatprep.subr.bf16.mxu0 0
    %481 = vmatpush1.bf16.msra.mxu0 0
    %482 = vmatprep.subr.bf16.mxu0 0
    %483 = vmatpush1.bf16.msra.mxu0 0
    %484 = vmatprep.subr.bf16.mxu0 0
    %485 = vmatpush1.bf16.msra.mxu0 0
    %486 = vmatprep.subr.bf16.mxu0 0
    %487 = vmatpush1.bf16.msra.mxu0 0
    %488 = vmatprep.subr.bf16.mxu0 0
    %489 = vmatpush1.bf16.msra.mxu0 0
    %490 = vmatprep.subr.bf16.mxu0 0
    %491 = vmatpush1.bf16.msra.mxu0 0
    %492 = vmatprep.subr.bf16.mxu0 0
    %493 = vmatpush1.bf16.msra.mxu0 0
    %494 = vmatprep.subr.bf16.mxu0 0
    %495 = vmatpush1.bf16.msra.mxu0 0
    %496 = vmatprep.subr.bf16.mxu0 0
    %497 = vmatpush1.bf16.msra.mxu0 0
    %498 = vmatprep.subr.bf16.mxu0 0
    %499 = vmatpush1.bf16.msra.mxu0 0
    %500 = vmatprep.mubr.bf16.mxu0 0
    %501 = vmatmul.mubr.bf16.gmra.mrb[0].mxu0 %v466
    %v502 = vpop.f32.mrb[0].mxu0
    %v503 = vadd.f32 %v462, %v502
    %v504 = vpop.f32.mrb[0].mxu0
    %v505 = vpop.f32.mrb[0].mxu0
    %v506 = vpop.f32.mrb[0].mxu0
    %507 = vdwg.mxu0
    %508 = vst [vmem:[#allocation2] sm:$0x3] %v503
    // Predicated region
    $region30: #{model_forward.1} parent=1 // pred_check
      _
    $region31: #{model_forward.1} parent=1 // pred_check_branch
      %510 = sbr.rel (0) target = $region33
    $region32: #{model_forward.1} parent=1 // pred_region
      %s512 = ssub.s32 32, 32
      %513 = vsyncadd [#allocation3], %s512
      %s515 = sshll.u32 [#allocation2], 4
      %s516 = int_to_ptr.vmem [resolvable:$true] %s515
      %518 = dma.vmem_to_hbm [thread:$0]  %s516, 32, %s7, [#allocation3]
    $region33: #{model_forward.1} parent=1 // pred_fallthru
      _
    // Predicated region
    $region34: #{model_forward.1} parent=1 // pred_check
      _
    $region35: #{model_forward.1} parent=1 // pred_check_branch
      %520 = sbr.rel (0) target = $region37
    $region36: #{model_forward.1} parent=1 // pred_region
      %521 = dma.done [#allocation3], 32
    $region37: #{model_forward.1} parent=1 // pred_fallthru
      _
    %522 = vsyncpa [#allocation3], 1

</llo_original>
